<compile_context>
chip_gen: v7x
topology: tpu7x:2x2x1
jax: 0.10.0
libtpu: 0.0.40
codegen_flags: <defaults>
</compile_context>

<pallas_src>
import functools

import numpy as np
import jax
import jax.numpy as jnp
from jax import lax
from jax.experimental import pallas as pl
from jax.experimental.pallas import tpu as pltpu

COMPUTE_DTYPE = jnp.bfloat16   # MXU inputs; accumulation / state stay float32


# ----------------------------------------------------------------------------
# Kernel 1: LSTM recurrence, single invocation for all T steps.
# ----------------------------------------------------------------------------
def _lstm_kernel(x_ref, w_ih_ref, w_hh_ref, b_ref, h_out_ref, gx_ref,
                 *, b_pad, hidden, n_steps):
    """x_ref    : (T*Bp, E)  bf16, time-major (rows t*Bp .. t*Bp+Bp-1 = step t)
       w_ih_ref : (E, 4H)    bf16
       w_hh_ref : (H, 4H)    bf16
       b_ref    : (1, 4H)    f32 (b_ih + b_hh)
       h_out_ref: (T*Bp, H)  bf16, time-major hidden states
       gx_ref   : (T*Bp, 4H) f32 VMEM scratch (precomputed x@W_ih + b)
    """
    H = hidden

    # (review #3) Input-to-gates for ALL steps in one well-shaped MXU matmul:
    # no recurrent dependency, so it comes off the serial critical path.
    gx_ref[...] = (
        jnp.dot(x_ref[...], w_ih_ref[...], preferred_element_type=jnp.float32)
        + b_ref[...])

    # Weights loaded once, resident for the whole unrolled recurrence.
    w_hh = w_hh_ref[...]

    h = jnp.zeros((b_pad, H), jnp.float32)
    c = jnp.zeros((b_pad, H), jnp.float32)

    # (review #1) Recurrence fully unrolled in-kernel (T small & static); only
    # h @ W_hh is serialized.  For large / dynamic T switch to lax.fori_loop
    # with h/c in VMEM scratch.
    for t in range(n_steps):
        row = t * b_pad                                   # static, multiple of 8
        gates = gx_ref[row:row + b_pad, :] + jnp.dot(
            h.astype(w_hh.dtype), w_hh, preferred_element_type=jnp.float32)

        # TODO(synk): for scaled-up H on v5e, extract gates from a lane-aligned
        # (4, B, H) layout instead of sub-128-lane slices of the 4H axis.
        i_g = jax.nn.sigmoid(gates[:, 0 * H:1 * H])
        f_g = jax.nn.sigmoid(gates[:, 1 * H:2 * H])
        g_g = jnp.tanh(gates[:, 2 * H:3 * H])
        o_g = jax.nn.sigmoid(gates[:, 3 * H:4 * H])

        c = f_g * c + i_g * g_g
        h = o_g * jnp.tanh(c)
        h_out_ref[row:row + b_pad, :] = h.astype(h_out_ref.dtype)


# ----------------------------------------------------------------------------
# Kernel 2: fc_out projection, one batched matmul tiled over (rows, vocab).
# ----------------------------------------------------------------------------
def _proj_kernel(h_ref, w_fc_ref, b_fc_ref, out_ref):
    """h_ref: (tm, H) bf16; w_fc_ref: (H, tn) bf16; b_fc_ref: (1, tn) f32."""
    out_ref[...] = (
        jnp.dot(h_ref[...], w_fc_ref[...], preferred_element_type=jnp.float32)
        + b_fc_ref[...]).astype(out_ref.dtype)


def _largest_divisor_tile(dim, cap):
    if dim <= cap:
        return dim
    for t in range(cap, 7, -8):
        if dim % t == 0:
            return t
    return dim


# ----------------------------------------------------------------------------
# Wrapper: DecoderRNN.forward semantics.
# ----------------------------------------------------------------------------
def decoder_rnn_forward(features, captions, params):
    """features: (B, E) f32; captions: (B, T) int32 -> logits (B, T, V) f32."""
    emb_table = params["embedding"]
    w_ih_t = params["w_ih_t"].astype(COMPUTE_DTYPE)     # (E, 4H)
    w_hh_t = params["w_hh_t"].astype(COMPUTE_DTYPE)     # (H, 4H)
    b_comb = params["b_comb"]                           # (1, 4H) f32
    w_fc_t = params["w_fc_t"].astype(COMPUTE_DTYPE)     # (H, V)
    b_fc = params["b_fc"]                               # (1, V)  f32

    # Glue: embedding lookup + concat of image features (plain JAX).
    cap_emb = emb_table[captions[:, :-1]]                          # (B, T-1, E)
    x = jnp.concatenate([features[:, None, :], cap_emb], axis=1)   # (B, T, E)
    B, T, E = x.shape
    H = params["w_hh_t"].shape[0]
    V = params["w_fc_t"].shape[1]

    # (review #4) Pad batch to a sublane multiple so every store is dense.
    Bp = ((B + 7) // 8) * 8
    if Bp != B:
        x = jnp.zeros((Bp, T, E), x.dtype).at[:B].set(x)

    # Time-major, flattened rows for the LSTM kernel: row = t*Bp + b.
    x_tm = jnp.transpose(x, (1, 0, 2)).reshape(T * Bp, E).astype(COMPUTE_DTYPE)
    M = T * Bp

    # --- LSTM recurrence: single grid point ---------------------------------
    h_tm = pl.pallas_call(
        functools.partial(_lstm_kernel, b_pad=Bp, hidden=H, n_steps=T),
        out_shape=jax.ShapeDtypeStruct((M, H), COMPUTE_DTYPE),
        grid_spec=pltpu.PrefetchScalarGridSpec(
            num_scalar_prefetch=0,
            grid=(1,),
            in_specs=[
                pl.BlockSpec((M, E), lambda i: (0, 0)),        # x (all steps)
                pl.BlockSpec((E, 4 * H), lambda i: (0, 0)),    # w_ih^T
                pl.BlockSpec((H, 4 * H), lambda i: (0, 0)),    # w_hh^T
                pl.BlockSpec((1, 4 * H), lambda i: (0, 0)),    # bias
            ],
            out_specs=pl.BlockSpec((M, H), lambda i: (0, 0)),
            scratch_shapes=[pltpu.VMEM((M, 4 * H), jnp.float32)],  # gates_x
        ),
        compiler_params=pltpu.CompilerParams(
            dimension_semantics=("arbitrary",)),
    )(x_tm, w_ih_t, w_hh_t, b_comb)

    # (review #5) Re-lay-out only the TINY h slab batch-first so the large
    # logits tensor is written batch-first directly by the projection kernel.
    h_bf = jnp.transpose(h_tm.reshape(T, Bp, H), (1, 0, 2)).reshape(Bp * T, H)

    # --- fc_out projection: one tiled matmul, parallel over row/vocab tiles --
    tm = _largest_divisor_tile(M, 256)
    tn = 128 if V % 128 == 0 else V
    logits = pl.pallas_call(
        _proj_kernel,
        out_shape=jax.ShapeDtypeStruct((Bp * T, V), jnp.float32),
        grid_spec=pltpu.PrefetchScalarGridSpec(
            num_scalar_prefetch=0,
            grid=(M // tm, V // tn),
            in_specs=[
                pl.BlockSpec((tm, H), lambda i, j: (i, 0)),    # h (batch-first)
                pl.BlockSpec((H, tn), lambda i, j: (0, j)),    # w_fc^T V-tile
                pl.BlockSpec((1, tn), lambda i, j: (0, j)),    # b_fc V-tile
            ],
            out_specs=pl.BlockSpec((tm, tn), lambda i, j: (i, j)),
        ),
        compiler_params=pltpu.CompilerParams(
            dimension_semantics=("parallel", "parallel")),
    )(h_bf, w_fc_t, b_fc)

    return logits.reshape(Bp, T, V)[:B]                  # (B, T, V), batch_first


# ----------------------------------------------------------------------------
# Parameters + pure-JAX reference (same bf16 casting, f32 accumulation).
# ----------------------------------------------------------------------------
def init_params(key, embed_size, hidden_size, vocab_size):
    ks = jax.random.split(key, 7)
    H, E, V = hidden_size, embed_size, vocab_size
    s = 1.0 / np.sqrt(H)
    embedding = jax.random.normal(ks[0], (V, E), jnp.float32)
    w_ih = jax.random.uniform(ks[1], (4 * H, E), jnp.float32, -s, s)
    w_hh = jax.random.uniform(ks[2], (4 * H, H), jnp.float32, -s, s)
    b_ih = jax.random.uniform(ks[3], (4 * H,), jnp.float32, -s, s)
    b_hh = jax.random.uniform(ks[4], (4 * H,), jnp.float32, -s, s)
    w_fc = jax.random.uniform(ks[5], (V, H), jnp.float32, -s, s)
    b_fc = jax.random.uniform(ks[6], (V,), jnp.float32, -s, s)
    return {
        "embedding": embedding,
        "w_ih_t": w_ih.T,                     # (E, 4H)
        "w_hh_t": w_hh.T,                     # (H, 4H)
        "b_comb": (b_ih + b_hh)[None, :],     # (1, 4H)
        "w_fc_t": w_fc.T,                     # (H, V)
        "b_fc": b_fc[None, :],                # (1, V)
    }


def decoder_rnn_reference(features, captions, params):
    cdt = COMPUTE_DTYPE
    emb = params["embedding"][captions[:, :-1]]
    x = jnp.concatenate([features[:, None, :], emb], axis=1).astype(cdt)
    w_ih = params["w_ih_t"].astype(cdt)
    w_hh = params["w_hh_t"].astype(cdt)
    w_fc = params["w_fc_t"].astype(cdt)
    b = params["b_comb"]
    H = params["w_hh_t"].shape[0]
    B = x.shape[0]

    def step(carry, x_t):
        h, c = carry
        gates = (jnp.dot(x_t, w_ih, preferred_element_type=jnp.float32)
                 + jnp.dot(h.astype(cdt), w_hh, preferred_element_type=jnp.float32)
                 + b)
        i = jax.nn.sigmoid(gates[:, 0 * H:1 * H])
        f = jax.nn.sigmoid(gates[:, 1 * H:2 * H])
        g = jnp.tanh(gates[:, 2 * H:3 * H])
        o = jax.nn.sigmoid(gates[:, 3 * H:4 * H])
        c = f * c + i * g
        h = o * jnp.tanh(c)
        return (h, c), h.astype(cdt)

    h0 = jnp.zeros((B, H), jnp.float32)
    c0 = jnp.zeros((B, H), jnp.float32)
    _, hs = lax.scan(step, (h0, c0), jnp.transpose(x, (1, 0, 2)))   # (T, B, H)
    lstm_out = jnp.transpose(hs, (1, 0, 2))                         # (B, T, H)
    return (jnp.dot(lstm_out, w_fc, preferred_element_type=jnp.float32)
            + params["b_fc"])                                       # (B, T, V)


if __name__ == "__main__":
    batch, seq = 2, 8
    embed_size, hidden_size, vocab_size = 32, 32, 256

    key = jax.random.PRNGKey(0)
    k_par, k_feat, k_cap = jax.random.split(key, 3)

    params = init_params(k_par, embed_size, hidden_size, vocab_size)
    features = jax.random.normal(k_feat, (batch, embed_size), jnp.float32)
    captions = jax.random.randint(k_cap, (batch, seq), 0, vocab_size, jnp.int32)

    out = jax.block_until_ready(decoder_rnn_forward(features, captions, params))
    ref = jax.block_until_ready(decoder_rnn_reference(features, captions, params))

    assert out.shape == (batch, seq, vocab_size)
    np.testing.assert_allclose(np.asarray(out, dtype=np.float32),
                               np.asarray(ref, dtype=np.float32),
                               rtol=5e-3, atol=5e-3)
    print("KERNEL_OK")
</pallas_src>

<mosaic_0001>
module attributes {stable_mosaic.version = 11 : i64} {
  func.func @_lstm_kernel(%arg0: i32, %arg1: memref<64x32xbf16, #tpu.memory_space<vmem>>, %arg2: memref<32x128xbf16, #tpu.memory_space<vmem>>, %arg3: memref<32x128xbf16, #tpu.memory_space<vmem>>, %arg4: memref<1x128xf32, #tpu.memory_space<vmem>>, %arg5: memref<64x32xbf16, #tpu.memory_space<vmem>>, %arg6: memref<64x128xf32, #tpu.memory_space<vmem>>) attributes {dimension_semantics = [#tpu.dimension_semantics<arbitrary>], iteration_bounds = array<i64: 1>, scalar_prefetch = 0 : i64, scratch_operands = 1 : i64, tpu.core_type = #tpu.core_type<tc>, window_params = [{pipeline_mode = #tpu.pipeline_mode<synchronous>, transform_indices = @transform_0, window_bounds = array<i64: 64, 32>}, {pipeline_mode = #tpu.pipeline_mode<synchronous>, transform_indices = @transform_1, window_bounds = array<i64: 32, 128>}, {pipeline_mode = #tpu.pipeline_mode<synchronous>, transform_indices = @transform_2, window_bounds = array<i64: 32, 128>}, {pipeline_mode = #tpu.pipeline_mode<synchronous>, transform_indices = @transform_3, window_bounds = array<i64: 1, 128>}, {pipeline_mode = #tpu.pipeline_mode<synchronous>, transform_indices = @transform_4, window_bounds = array<i64: 64, 32>}]} {
    %c0 = arith.constant 0 : index
    %c0_0 = arith.constant 0 : index
    %0 = vector.load %arg1[%c0, %c0_0] : memref<64x32xbf16, #tpu.memory_space<vmem>>, vector<64x32xbf16>
    %c0_1 = arith.constant 0 : index
    %c0_2 = arith.constant 0 : index
    %1 = vector.load %arg2[%c0_1, %c0_2] : memref<32x128xbf16, #tpu.memory_space<vmem>>, vector<32x128xbf16>
    %cst = arith.constant dense<0.000000e+00> : vector<64x128xf32>
    %2 = tpu.matmul %0, %1, %cst {dimension_numbers = #tpu.dot_dimension_numbers<[1], [0], [0], [1], [0, 0, 1, 1], [], []>} : vector<64x32xbf16>, vector<32x128xbf16>, vector<64x128xf32> -> vector<64x128xf32>
    %c0_3 = arith.constant 0 : index
    %c0_4 = arith.constant 0 : index
    %3 = vector.load %arg4[%c0_3, %c0_4] : memref<1x128xf32, #tpu.memory_space<vmem>>, vector<1x128xf32>
    %4 = vector.broadcast %3 : vector<1x128xf32> to vector<64x128xf32>
    %5 = arith.addf %2, %4 : vector<64x128xf32>
    %c0_5 = arith.constant 0 : index
    %c0_6 = arith.constant 0 : index
    %6 = vector.load %arg6[%c0_5, %c0_6] : memref<64x128xf32, #tpu.memory_space<vmem>>, vector<64x128xf32>
    tpu.vector_store %arg6[%c0_5, %c0_6], %5 {strides = array<i32>} : memref<64x128xf32, #tpu.memory_space<vmem>>, vector<64x128xf32>,
    %c0_7 = arith.constant 0 : index
    %c0_8 = arith.constant 0 : index
    %7 = vector.load %arg3[%c0_7, %c0_8] : memref<32x128xbf16, #tpu.memory_space<vmem>>, vector<32x128xbf16>
    %cst_9 = arith.constant 0.000000e+00 : f32
    %8 = vector.broadcast %cst_9 : f32 to vector<8x32xf32>
    %cst_10 = arith.constant 0.000000e+00 : f32
    %9 = vector.broadcast %cst_10 : f32 to vector<8x32xf32>
    %c0_11 = arith.constant 0 : index
    %c0_12 = arith.constant 0 : index
    %10 = vector.load %arg6[%c0_11, %c0_12] : memref<64x128xf32, #tpu.memory_space<vmem>>, vector<8x128xf32>
    %11 = arith.truncf %8 : vector<8x32xf32> to vector<8x32xbf16>
    %cst_13 = arith.constant dense<0.000000e+00> : vector<8x128xf32>
    %12 = tpu.matmul %11, %7, %cst_13 {dimension_numbers = #tpu.dot_dimension_numbers<[1], [0], [0], [1], [0, 0, 1, 1], [], []>} : vector<8x32xbf16>, vector<32x128xbf16>, vector<8x128xf32> -> vector<8x128xf32>
    %13 = arith.addf %10, %12 : vector<8x128xf32>
    %14 = vector.extract_strided_slice %13 {offsets = [0, 0], sizes = [8, 32], strides = [1, 1]} : vector<8x128xf32> to vector<8x32xf32>
    %15 = arith.negf %14 : vector<8x32xf32>
    %16 = math.exp %15 : vector<8x32xf32>
    %cst_14 = arith.constant 1.000000e+00 : f32
    %17 = vector.broadcast %cst_14 : f32 to vector<8x32xf32>
    %18 = arith.addf %17, %16 : vector<8x32xf32>
    %19 = arith.divf %17, %18 : vector<8x32xf32>
    %20 = vector.extract_strided_slice %13 {offsets = [0, 32], sizes = [8, 32], strides = [1, 1]} : vector<8x128xf32> to vector<8x32xf32>
    %21 = arith.negf %20 : vector<8x32xf32>
    %22 = math.exp %21 : vector<8x32xf32>
    %cst_15 = arith.constant 1.000000e+00 : f32
    %23 = vector.broadcast %cst_15 : f32 to vector<8x32xf32>
    %24 = arith.addf %23, %22 : vector<8x32xf32>
    %25 = arith.divf %23, %24 : vector<8x32xf32>
    %26 = vector.extract_strided_slice %13 {offsets = [0, 64], sizes = [8, 32], strides = [1, 1]} : vector<8x128xf32> to vector<8x32xf32>
    %27 = math.tanh %26 : vector<8x32xf32>
    %28 = vector.extract_strided_slice %13 {offsets = [0, 96], sizes = [8, 32], strides = [1, 1]} : vector<8x128xf32> to vector<8x32xf32>
    %29 = arith.negf %28 : vector<8x32xf32>
    %30 = math.exp %29 : vector<8x32xf32>
    %cst_16 = arith.constant 1.000000e+00 : f32
    %31 = vector.broadcast %cst_16 : f32 to vector<8x32xf32>
    %32 = arith.addf %31, %30 : vector<8x32xf32>
    %33 = arith.divf %31, %32 : vector<8x32xf32>
    %34 = arith.mulf %25, %9 : vector<8x32xf32>
    %35 = arith.mulf %19, %27 : vector<8x32xf32>
    %36 = arith.addf %34, %35 : vector<8x32xf32>
    %37 = math.tanh %36 : vector<8x32xf32>
    %38 = arith.mulf %33, %37 : vector<8x32xf32>
    %39 = arith.truncf %38 : vector<8x32xf32> to vector<8x32xbf16>
    %c0_17 = arith.constant 0 : index
    %c0_18 = arith.constant 0 : index
    %40 = vector.load %arg5[%c0_17, %c0_18] : memref<64x32xbf16, #tpu.memory_space<vmem>>, vector<8x32xbf16>
    tpu.vector_store %arg5[%c0_17, %c0_18], %39 {strides = array<i32>} : memref<64x32xbf16, #tpu.memory_space<vmem>>, vector<8x32xbf16>,
    %c8 = arith.constant 8 : index
    %c0_19 = arith.constant 0 : index
    %41 = vector.load %arg6[%c8, %c0_19] : memref<64x128xf32, #tpu.memory_space<vmem>>, vector<8x128xf32>
    %42 = arith.truncf %38 : vector<8x32xf32> to vector<8x32xbf16>
    %cst_20 = arith.constant dense<0.000000e+00> : vector<8x128xf32>
    %43 = tpu.matmul %42, %7, %cst_20 {dimension_numbers = #tpu.dot_dimension_numbers<[1], [0], [0], [1], [0, 0, 1, 1], [], []>} : vector<8x32xbf16>, vector<32x128xbf16>, vector<8x128xf32> -> vector<8x128xf32>
    %44 = arith.addf %41, %43 : vector<8x128xf32>
    %45 = vector.extract_strided_slice %44 {offsets = [0, 0], sizes = [8, 32], strides = [1, 1]} : vector<8x128xf32> to vector<8x32xf32>
    %46 = arith.negf %45 : vector<8x32xf32>
    %47 = math.exp %46 : vector<8x32xf32>
    %cst_21 = arith.constant 1.000000e+00 : f32
    %48 = vector.broadcast %cst_21 : f32 to vector<8x32xf32>
    %49 = arith.addf %48, %47 : vector<8x32xf32>
    %50 = arith.divf %48, %49 : vector<8x32xf32>
    %51 = vector.extract_strided_slice %44 {offsets = [0, 32], sizes = [8, 32], strides = [1, 1]} : vector<8x128xf32> to vector<8x32xf32>
    %52 = arith.negf %51 : vector<8x32xf32>
    %53 = math.exp %52 : vector<8x32xf32>
    %cst_22 = arith.constant 1.000000e+00 : f32
    %54 = vector.broadcast %cst_22 : f32 to vector<8x32xf32>
    %55 = arith.addf %54, %53 : vector<8x32xf32>
    %56 = arith.divf %54, %55 : vector<8x32xf32>
    %57 = vector.extract_strided_slice %44 {offsets = [0, 64], sizes = [8, 32], strides = [1, 1]} : vector<8x128xf32> to vector<8x32xf32>
    %58 = math.tanh %57 : vector<8x32xf32>
    %59 = vector.extract_strided_slice %44 {offsets = [0, 96], sizes = [8, 32], strides = [1, 1]} : vector<8x128xf32> to vector<8x32xf32>
    %60 = arith.negf %59 : vector<8x32xf32>
    %61 = math.exp %60 : vector<8x32xf32>
    %cst_23 = arith.constant 1.000000e+00 : f32
    %62 = vector.broadcast %cst_23 : f32 to vector<8x32xf32>
    %63 = arith.addf %62, %61 : vector<8x32xf32>
    %64 = arith.divf %62, %63 : vector<8x32xf32>
    %65 = arith.mulf %56, %36 : vector<8x32xf32>
    %66 = arith.mulf %50, %58 : vector<8x32xf32>
    %67 = arith.addf %65, %66 : vector<8x32xf32>
    %68 = math.tanh %67 : vector<8x32xf32>
    %69 = arith.mulf %64, %68 : vector<8x32xf32>
    %70 = arith.truncf %69 : vector<8x32xf32> to vector<8x32xbf16>
    %c8_24 = arith.constant 8 : index
    %c0_25 = arith.constant 0 : index
    %71 = vector.load %arg5[%c8_24, %c0_25] : memref<64x32xbf16, #tpu.memory_space<vmem>>, vector<8x32xbf16>
    tpu.vector_store %arg5[%c8_24, %c0_25], %70 {strides = array<i32>} : memref<64x32xbf16, #tpu.memory_space<vmem>>, vector<8x32xbf16>,
    %c16 = arith.constant 16 : index
    %c0_26 = arith.constant 0 : index
    %72 = vector.load %arg6[%c16, %c0_26] : memref<64x128xf32, #tpu.memory_space<vmem>>, vector<8x128xf32>
    %73 = arith.truncf %69 : vector<8x32xf32> to vector<8x32xbf16>
    %cst_27 = arith.constant dense<0.000000e+00> : vector<8x128xf32>
    %74 = tpu.matmul %73, %7, %cst_27 {dimension_numbers = #tpu.dot_dimension_numbers<[1], [0], [0], [1], [0, 0, 1, 1], [], []>} : vector<8x32xbf16>, vector<32x128xbf16>, vector<8x128xf32> -> vector<8x128xf32>
    %75 = arith.addf %72, %74 : vector<8x128xf32>
    %76 = vector.extract_strided_slice %75 {offsets = [0, 0], sizes = [8, 32], strides = [1, 1]} : vector<8x128xf32> to vector<8x32xf32>
    %77 = arith.negf %76 : vector<8x32xf32>
    %78 = math.exp %77 : vector<8x32xf32>
    %cst_28 = arith.constant 1.000000e+00 : f32
    %79 = vector.broadcast %cst_28 : f32 to vector<8x32xf32>
    %80 = arith.addf %79, %78 : vector<8x32xf32>
    %81 = arith.divf %79, %80 : vector<8x32xf32>
    %82 = vector.extract_strided_slice %75 {offsets = [0, 32], sizes = [8, 32], strides = [1, 1]} : vector<8x128xf32> to vector<8x32xf32>
    %83 = arith.negf %82 : vector<8x32xf32>
    %84 = math.exp %83 : vector<8x32xf32>
    %cst_29 = arith.constant 1.000000e+00 : f32
    %85 = vector.broadcast %cst_29 : f32 to vector<8x32xf32>
    %86 = arith.addf %85, %84 : vector<8x32xf32>
    %87 = arith.divf %85, %86 : vector<8x32xf32>
    %88 = vector.extract_strided_slice %75 {offsets = [0, 64], sizes = [8, 32], strides = [1, 1]} : vector<8x128xf32> to vector<8x32xf32>
    %89 = math.tanh %88 : vector<8x32xf32>
    %90 = vector.extract_strided_slice %75 {offsets = [0, 96], sizes = [8, 32], strides = [1, 1]} : vector<8x128xf32> to vector<8x32xf32>
    %91 = arith.negf %90 : vector<8x32xf32>
    %92 = math.exp %91 : vector<8x32xf32>
    %cst_30 = arith.constant 1.000000e+00 : f32
    %93 = vector.broadcast %cst_30 : f32 to vector<8x32xf32>
    %94 = arith.addf %93, %92 : vector<8x32xf32>
    %95 = arith.divf %93, %94 : vector<8x32xf32>
    %96 = arith.mulf %87, %67 : vector<8x32xf32>
    %97 = arith.mulf %81, %89 : vector<8x32xf32>
    %98 = arith.addf %96, %97 : vector<8x32xf32>
    %99 = math.tanh %98 : vector<8x32xf32>
    %100 = arith.mulf %95, %99 : vector<8x32xf32>
    %101 = arith.truncf %100 : vector<8x32xf32> to vector<8x32xbf16>
    %c16_31 = arith.constant 16 : index
    %c0_32 = arith.constant 0 : index
    %102 = vector.load %arg5[%c16_31, %c0_32] : memref<64x32xbf16, #tpu.memory_space<vmem>>, vector<8x32xbf16>
    tpu.vector_store %arg5[%c16_31, %c0_32], %101 {strides = array<i32>} : memref<64x32xbf16, #tpu.memory_space<vmem>>, vector<8x32xbf16>,
    %c24 = arith.constant 24 : index
    %c0_33 = arith.constant 0 : index
    %103 = vector.load %arg6[%c24, %c0_33] : memref<64x128xf32, #tpu.memory_space<vmem>>, vector<8x128xf32>
    %104 = arith.truncf %100 : vector<8x32xf32> to vector<8x32xbf16>
    %cst_34 = arith.constant dense<0.000000e+00> : vector<8x128xf32>
    %105 = tpu.matmul %104, %7, %cst_34 {dimension_numbers = #tpu.dot_dimension_numbers<[1], [0], [0], [1], [0, 0, 1, 1], [], []>} : vector<8x32xbf16>, vector<32x128xbf16>, vector<8x128xf32> -> vector<8x128xf32>
    %106 = arith.addf %103, %105 : vector<8x128xf32>
    %107 = vector.extract_strided_slice %106 {offsets = [0, 0], sizes = [8, 32], strides = [1, 1]} : vector<8x128xf32> to vector<8x32xf32>
    %108 = arith.negf %107 : vector<8x32xf32>
    %109 = math.exp %108 : vector<8x32xf32>
    %cst_35 = arith.constant 1.000000e+00 : f32
    %110 = vector.broadcast %cst_35 : f32 to vector<8x32xf32>
    %111 = arith.addf %110, %109 : vector<8x32xf32>
    %112 = arith.divf %110, %111 : vector<8x32xf32>
    %113 = vector.extract_strided_slice %106 {offsets = [0, 32], sizes = [8, 32], strides = [1, 1]} : vector<8x128xf32> to vector<8x32xf32>
    %114 = arith.negf %113 : vector<8x32xf32>
    %115 = math.exp %114 : vector<8x32xf32>
    %cst_36 = arith.constant 1.000000e+00 : f32
    %116 = vector.broadcast %cst_36 : f32 to vector<8x32xf32>
    %117 = arith.addf %116, %115 : vector<8x32xf32>
    %118 = arith.divf %116, %117 : vector<8x32xf32>
    %119 = vector.extract_strided_slice %106 {offsets = [0, 64], sizes = [8, 32], strides = [1, 1]} : vector<8x128xf32> to vector<8x32xf32>
    %120 = math.tanh %119 : vector<8x32xf32>
    %121 = vector.extract_strided_slice %106 {offsets = [0, 96], sizes = [8, 32], strides = [1, 1]} : vector<8x128xf32> to vector<8x32xf32>
    %122 = arith.negf %121 : vector<8x32xf32>
    %123 = math.exp %122 : vector<8x32xf32>
    %cst_37 = arith.constant 1.000000e+00 : f32
    %124 = vector.broadcast %cst_37 : f32 to vector<8x32xf32>
    %125 = arith.addf %124, %123 : vector<8x32xf32>
    %126 = arith.divf %124, %125 : vector<8x32xf32>
    %127 = arith.mulf %118, %98 : vector<8x32xf32>
    %128 = arith.mulf %112, %120 : vector<8x32xf32>
    %129 = arith.addf %127, %128 : vector<8x32xf32>
    %130 = math.tanh %129 : vector<8x32xf32>
    %131 = arith.mulf %126, %130 : vector<8x32xf32>
    %132 = arith.truncf %131 : vector<8x32xf32> to vector<8x32xbf16>
    %c24_38 = arith.constant 24 : index
    %c0_39 = arith.constant 0 : index
    %133 = vector.load %arg5[%c24_38, %c0_39] : memref<64x32xbf16, #tpu.memory_space<vmem>>, vector<8x32xbf16>
    tpu.vector_store %arg5[%c24_38, %c0_39], %132 {strides = array<i32>} : memref<64x32xbf16, #tpu.memory_space<vmem>>, vector<8x32xbf16>,
    %c32 = arith.constant 32 : index
    %c0_40 = arith.constant 0 : index
    %134 = vector.load %arg6[%c32, %c0_40] : memref<64x128xf32, #tpu.memory_space<vmem>>, vector<8x128xf32>
    %135 = arith.truncf %131 : vector<8x32xf32> to vector<8x32xbf16>
    %cst_41 = arith.constant dense<0.000000e+00> : vector<8x128xf32>
    %136 = tpu.matmul %135, %7, %cst_41 {dimension_numbers = #tpu.dot_dimension_numbers<[1], [0], [0], [1], [0, 0, 1, 1], [], []>} : vector<8x32xbf16>, vector<32x128xbf16>, vector<8x128xf32> -> vector<8x128xf32>
    %137 = arith.addf %134, %136 : vector<8x128xf32>
    %138 = vector.extract_strided_slice %137 {offsets = [0, 0], sizes = [8, 32], strides = [1, 1]} : vector<8x128xf32> to vector<8x32xf32>
    %139 = arith.negf %138 : vector<8x32xf32>
    %140 = math.exp %139 : vector<8x32xf32>
    %cst_42 = arith.constant 1.000000e+00 : f32
    %141 = vector.broadcast %cst_42 : f32 to vector<8x32xf32>
    %142 = arith.addf %141, %140 : vector<8x32xf32>
    %143 = arith.divf %141, %142 : vector<8x32xf32>
    %144 = vector.extract_strided_slice %137 {offsets = [0, 32], sizes = [8, 32], strides = [1, 1]} : vector<8x128xf32> to vector<8x32xf32>
    %145 = arith.negf %144 : vector<8x32xf32>
    %146 = math.exp %145 : vector<8x32xf32>
    %cst_43 = arith.constant 1.000000e+00 : f32
    %147 = vector.broadcast %cst_43 : f32 to vector<8x32xf32>
    %148 = arith.addf %147, %146 : vector<8x32xf32>
    %149 = arith.divf %147, %148 : vector<8x32xf32>
    %150 = vector.extract_strided_slice %137 {offsets = [0, 64], sizes = [8, 32], strides = [1, 1]} : vector<8x128xf32> to vector<8x32xf32>
    %151 = math.tanh %150 : vector<8x32xf32>
    %152 = vector.extract_strided_slice %137 {offsets = [0, 96], sizes = [8, 32], strides = [1, 1]} : vector<8x128xf32> to vector<8x32xf32>
    %153 = arith.negf %152 : vector<8x32xf32>
    %154 = math.exp %153 : vector<8x32xf32>
    %cst_44 = arith.constant 1.000000e+00 : f32
    %155 = vector.broadcast %cst_44 : f32 to vector<8x32xf32>
    %156 = arith.addf %155, %154 : vector<8x32xf32>
    %157 = arith.divf %155, %156 : vector<8x32xf32>
    %158 = arith.mulf %149, %129 : vector<8x32xf32>
    %159 = arith.mulf %143, %151 : vector<8x32xf32>
    %160 = arith.addf %158, %159 : vector<8x32xf32>
    %161 = math.tanh %160 : vector<8x32xf32>
    %162 = arith.mulf %157, %161 : vector<8x32xf32>
    %163 = arith.truncf %162 : vector<8x32xf32> to vector<8x32xbf16>
    %c32_45 = arith.constant 32 : index
    %c0_46 = arith.constant 0 : index
    %164 = vector.load %arg5[%c32_45, %c0_46] : memref<64x32xbf16, #tpu.memory_space<vmem>>, vector<8x32xbf16>
    tpu.vector_store %arg5[%c32_45, %c0_46], %163 {strides = array<i32>} : memref<64x32xbf16, #tpu.memory_space<vmem>>, vector<8x32xbf16>,
    %c40 = arith.constant 40 : index
    %c0_47 = arith.constant 0 : index
    %165 = vector.load %arg6[%c40, %c0_47] : memref<64x128xf32, #tpu.memory_space<vmem>>, vector<8x128xf32>
    %166 = arith.truncf %162 : vector<8x32xf32> to vector<8x32xbf16>
    %cst_48 = arith.constant dense<0.000000e+00> : vector<8x128xf32>
    %167 = tpu.matmul %166, %7, %cst_48 {dimension_numbers = #tpu.dot_dimension_numbers<[1], [0], [0], [1], [0, 0, 1, 1], [], []>} : vector<8x32xbf16>, vector<32x128xbf16>, vector<8x128xf32> -> vector<8x128xf32>
    %168 = arith.addf %165, %167 : vector<8x128xf32>
    %169 = vector.extract_strided_slice %168 {offsets = [0, 0], sizes = [8, 32], strides = [1, 1]} : vector<8x128xf32> to vector<8x32xf32>
    %170 = arith.negf %169 : vector<8x32xf32>
    %171 = math.exp %170 : vector<8x32xf32>
    %cst_49 = arith.constant 1.000000e+00 : f32
    %172 = vector.broadcast %cst_49 : f32 to vector<8x32xf32>
    %173 = arith.addf %172, %171 : vector<8x32xf32>
    %174 = arith.divf %172, %173 : vector<8x32xf32>
    %175 = vector.extract_strided_slice %168 {offsets = [0, 32], sizes = [8, 32], strides = [1, 1]} : vector<8x128xf32> to vector<8x32xf32>
    %176 = arith.negf %175 : vector<8x32xf32>
    %177 = math.exp %176 : vector<8x32xf32>
    %cst_50 = arith.constant 1.000000e+00 : f32
    %178 = vector.broadcast %cst_50 : f32 to vector<8x32xf32>
    %179 = arith.addf %178, %177 : vector<8x32xf32>
    %180 = arith.divf %178, %179 : vector<8x32xf32>
    %181 = vector.extract_strided_slice %168 {offsets = [0, 64], sizes = [8, 32], strides = [1, 1]} : vector<8x128xf32> to vector<8x32xf32>
    %182 = math.tanh %181 : vector<8x32xf32>
    %183 = vector.extract_strided_slice %168 {offsets = [0, 96], sizes = [8, 32], strides = [1, 1]} : vector<8x128xf32> to vector<8x32xf32>
    %184 = arith.negf %183 : vector<8x32xf32>
    %185 = math.exp %184 : vector<8x32xf32>
    %cst_51 = arith.constant 1.000000e+00 : f32
    %186 = vector.broadcast %cst_51 : f32 to vector<8x32xf32>
    %187 = arith.addf %186, %185 : vector<8x32xf32>
    %188 = arith.divf %186, %187 : vector<8x32xf32>
    %189 = arith.mulf %180, %160 : vector<8x32xf32>
    %190 = arith.mulf %174, %182 : vector<8x32xf32>
    %191 = arith.addf %189, %190 : vector<8x32xf32>
    %192 = math.tanh %191 : vector<8x32xf32>
    %193 = arith.mulf %188, %192 : vector<8x32xf32>
    %194 = arith.truncf %193 : vector<8x32xf32> to vector<8x32xbf16>
    %c40_52 = arith.constant 40 : index
    %c0_53 = arith.constant 0 : index
    %195 = vector.load %arg5[%c40_52, %c0_53] : memref<64x32xbf16, #tpu.memory_space<vmem>>, vector<8x32xbf16>
    tpu.vector_store %arg5[%c40_52, %c0_53], %194 {strides = array<i32>} : memref<64x32xbf16, #tpu.memory_space<vmem>>, vector<8x32xbf16>,
    %c48 = arith.constant 48 : index
    %c0_54 = arith.constant 0 : index
    %196 = vector.load %arg6[%c48, %c0_54] : memref<64x128xf32, #tpu.memory_space<vmem>>, vector<8x128xf32>
    %197 = arith.truncf %193 : vector<8x32xf32> to vector<8x32xbf16>
    %cst_55 = arith.constant dense<0.000000e+00> : vector<8x128xf32>
    %198 = tpu.matmul %197, %7, %cst_55 {dimension_numbers = #tpu.dot_dimension_numbers<[1], [0], [0], [1], [0, 0, 1, 1], [], []>} : vector<8x32xbf16>, vector<32x128xbf16>, vector<8x128xf32> -> vector<8x128xf32>
    %199 = arith.addf %196, %198 : vector<8x128xf32>
    %200 = vector.extract_strided_slice %199 {offsets = [0, 0], sizes = [8, 32], strides = [1, 1]} : vector<8x128xf32> to vector<8x32xf32>
    %201 = arith.negf %200 : vector<8x32xf32>
    %202 = math.exp %201 : vector<8x32xf32>
    %cst_56 = arith.constant 1.000000e+00 : f32
    %203 = vector.broadcast %cst_56 : f32 to vector<8x32xf32>
    %204 = arith.addf %203, %202 : vector<8x32xf32>
    %205 = arith.divf %203, %204 : vector<8x32xf32>
    %206 = vector.extract_strided_slice %199 {offsets = [0, 32], sizes = [8, 32], strides = [1, 1]} : vector<8x128xf32> to vector<8x32xf32>
    %207 = arith.negf %206 : vector<8x32xf32>
    %208 = math.exp %207 : vector<8x32xf32>
    %cst_57 = arith.constant 1.000000e+00 : f32
    %209 = vector.broadcast %cst_57 : f32 to vector<8x32xf32>
    %210 = arith.addf %209, %208 : vector<8x32xf32>
    %211 = arith.divf %209, %210 : vector<8x32xf32>
    %212 = vector.extract_strided_slice %199 {offsets = [0, 64], sizes = [8, 32], strides = [1, 1]} : vector<8x128xf32> to vector<8x32xf32>
    %213 = math.tanh %212 : vector<8x32xf32>
    %214 = vector.extract_strided_slice %199 {offsets = [0, 96], sizes = [8, 32], strides = [1, 1]} : vector<8x128xf32> to vector<8x32xf32>
    %215 = arith.negf %214 : vector<8x32xf32>
    %216 = math.exp %215 : vector<8x32xf32>
    %cst_58 = arith.constant 1.000000e+00 : f32
    %217 = vector.broadcast %cst_58 : f32 to vector<8x32xf32>
    %218 = arith.addf %217, %216 : vector<8x32xf32>
    %219 = arith.divf %217, %218 : vector<8x32xf32>
    %220 = arith.mulf %211, %191 : vector<8x32xf32>
    %221 = arith.mulf %205, %213 : vector<8x32xf32>
    %222 = arith.addf %220, %221 : vector<8x32xf32>
    %223 = math.tanh %222 : vector<8x32xf32>
    %224 = arith.mulf %219, %223 : vector<8x32xf32>
    %225 = arith.truncf %224 : vector<8x32xf32> to vector<8x32xbf16>
    %c48_59 = arith.constant 48 : index
    %c0_60 = arith.constant 0 : index
    %226 = vector.load %arg5[%c48_59, %c0_60] : memref<64x32xbf16, #tpu.memory_space<vmem>>, vector<8x32xbf16>
    tpu.vector_store %arg5[%c48_59, %c0_60], %225 {strides = array<i32>} : memref<64x32xbf16, #tpu.memory_space<vmem>>, vector<8x32xbf16>,
    %c56 = arith.constant 56 : index
    %c0_61 = arith.constant 0 : index
    %227 = vector.load %arg6[%c56, %c0_61] : memref<64x128xf32, #tpu.memory_space<vmem>>, vector<8x128xf32>
    %228 = arith.truncf %224 : vector<8x32xf32> to vector<8x32xbf16>
    %cst_62 = arith.constant dense<0.000000e+00> : vector<8x128xf32>
    %229 = tpu.matmul %228, %7, %cst_62 {dimension_numbers = #tpu.dot_dimension_numbers<[1], [0], [0], [1], [0, 0, 1, 1], [], []>} : vector<8x32xbf16>, vector<32x128xbf16>, vector<8x128xf32> -> vector<8x128xf32>
    %230 = arith.addf %227, %229 : vector<8x128xf32>
    %231 = vector.extract_strided_slice %230 {offsets = [0, 0], sizes = [8, 32], strides = [1, 1]} : vector<8x128xf32> to vector<8x32xf32>
    %232 = arith.negf %231 : vector<8x32xf32>
    %233 = math.exp %232 : vector<8x32xf32>
    %cst_63 = arith.constant 1.000000e+00 : f32
    %234 = vector.broadcast %cst_63 : f32 to vector<8x32xf32>
    %235 = arith.addf %234, %233 : vector<8x32xf32>
    %236 = arith.divf %234, %235 : vector<8x32xf32>
    %237 = vector.extract_strided_slice %230 {offsets = [0, 32], sizes = [8, 32], strides = [1, 1]} : vector<8x128xf32> to vector<8x32xf32>
    %238 = arith.negf %237 : vector<8x32xf32>
    %239 = math.exp %238 : vector<8x32xf32>
    %cst_64 = arith.constant 1.000000e+00 : f32
    %240 = vector.broadcast %cst_64 : f32 to vector<8x32xf32>
    %241 = arith.addf %240, %239 : vector<8x32xf32>
    %242 = arith.divf %240, %241 : vector<8x32xf32>
    %243 = vector.extract_strided_slice %230 {offsets = [0, 64], sizes = [8, 32], strides = [1, 1]} : vector<8x128xf32> to vector<8x32xf32>
    %244 = math.tanh %243 : vector<8x32xf32>
    %245 = vector.extract_strided_slice %230 {offsets = [0, 96], sizes = [8, 32], strides = [1, 1]} : vector<8x128xf32> to vector<8x32xf32>
    %246 = arith.negf %245 : vector<8x32xf32>
    %247 = math.exp %246 : vector<8x32xf32>
    %cst_65 = arith.constant 1.000000e+00 : f32
    %248 = vector.broadcast %cst_65 : f32 to vector<8x32xf32>
    %249 = arith.addf %248, %247 : vector<8x32xf32>
    %250 = arith.divf %248, %249 : vector<8x32xf32>
    %251 = arith.mulf %242, %222 : vector<8x32xf32>
    %252 = arith.mulf %236, %244 : vector<8x32xf32>
    %253 = arith.addf %251, %252 : vector<8x32xf32>
    %254 = math.tanh %253 : vector<8x32xf32>
    %255 = arith.mulf %250, %254 : vector<8x32xf32>
    %256 = arith.truncf %255 : vector<8x32xf32> to vector<8x32xbf16>
    %c56_66 = arith.constant 56 : index
    %c0_67 = arith.constant 0 : index
    %257 = vector.load %arg5[%c56_66, %c0_67] : memref<64x32xbf16, #tpu.memory_space<vmem>>, vector<8x32xbf16>
    tpu.vector_store %arg5[%c56_66, %c0_67], %256 {strides = array<i32>} : memref<64x32xbf16, #tpu.memory_space<vmem>>, vector<8x32xbf16>,
    return
  }
  func.func @transform_0(%arg0: i32) -> (i32, i32) {
    %c0_i32 = arith.constant 0 : i32
    %c0_i32_0 = arith.constant 0 : i32
    %c0_i32_1 = arith.constant 0 : i32
    return %c0_i32, %c0_i32_0 : i32, i32
  }
  func.func @transform_1(%arg0: i32) -> (i32, i32) {
    %c0_i32 = arith.constant 0 : i32
    %c0_i32_0 = arith.constant 0 : i32
    %c0_i32_1 = arith.constant 0 : i32
    return %c0_i32, %c0_i32_0 : i32, i32
  }
  func.func @transform_2(%arg0: i32) -> (i32, i32) {
    %c0_i32 = arith.constant 0 : i32
    %c0_i32_0 = arith.constant 0 : i32
    %c0_i32_1 = arith.constant 0 : i32
    return %c0_i32, %c0_i32_0 : i32, i32
  }
  func.func @transform_3(%arg0: i32) -> (i32, i32) {
    %c0_i32 = arith.constant 0 : i32
    %c0_i32_0 = arith.constant 0 : i32
    %c0_i32_1 = arith.constant 0 : i32
    return %c0_i32, %c0_i32_0 : i32, i32
  }
  func.func @transform_4(%arg0: i32) -> (i32, i32) {
    %c0_i32 = arith.constant 0 : i32
    %c0_i32_0 = arith.constant 0 : i32
    %c0_i32_1 = arith.constant 0 : i32
    return %c0_i32, %c0_i32_0 : i32, i32
  }
}

</mosaic_0001>

<llo_original>
// kernel: tpu_custom_call.1
$region0: #{tpu_custom_call.1}
  #allocation0 [shape = 'u32[]', space=smem, size = 0x4, offset = 0x4, fixed_abs, tag = 'smem constant byte address 0x4 - core index']
  #allocation1 [shape = 'u32[144,128]{1,0:T(1,128)}', space=vmem, size = 0x12000, scoped, tag = 'internal scratch']
  #allocation2 [shape = 'f32[64,128]{1,0:T(8,128)}', space=vmem, size = 0x8000, scoped, tag = 'scratch operand']
  %s0 = inlined_call_operand.vmem [shape: bf16[64,32], index: 0, kind: input, shape index: {}]
  %s1 = inlined_call_operand.vmem [shape: bf16[32,128], index: 1, kind: input, shape index: {}]
  %s2 = inlined_call_operand.vmem [shape: bf16[32,128], index: 2, kind: input, shape index: {}]
  %s3 = inlined_call_operand.vmem [shape: f32[1,128], index: 3, kind: input, shape index: {}]
  %s4 = inlined_call_operand.vmem [shape: bf16[64,32], index: 4, kind: output, shape index: {}]
  %s5 = sld [smem:[#allocation0]]
  $region26: #{tpu_custom_call.1} parent=0
    _
  %s7 = ssub.s32 1, %s5
  %s8 = scalar_select 0, %s7, %s5
  // Predicated region
  $region2: #{tpu_custom_call.1} parent=0 // pred_check
    _
  $region3: #{tpu_custom_call.1} parent=0 // pred_check_branch
    %10 = sbr.rel (0) target = $region5
  $region4: #{tpu_custom_call.1} parent=0 // pred_region
    _
  $region5: #{tpu_custom_call.1} parent=0 // pred_fallthru
    _
  // Predicated region
  $region6: #{tpu_custom_call.1} parent=0 // pred_check
    _
  $region7: #{tpu_custom_call.1} parent=0 // pred_check_branch
    %12 = sbr.rel (0) target = $region9
  $region8: #{tpu_custom_call.1} parent=0 // pred_region
    _
  $region9: #{tpu_custom_call.1} parent=0 // pred_fallthru
    _
  // Predicated region
  $region10: #{tpu_custom_call.1} parent=0 // pred_check
    _
  $region11: #{tpu_custom_call.1} parent=0 // pred_check_branch
    %14 = sbr.rel (0) target = $region13
  $region12: #{tpu_custom_call.1} parent=0 // pred_region
    _
  $region13: #{tpu_custom_call.1} parent=0 // pred_fallthru
    _
  // Predicated region
  $region14: #{tpu_custom_call.1} parent=0 // pred_check
    _
  $region15: #{tpu_custom_call.1} parent=0 // pred_check_branch
    %16 = sbr.rel (0) target = $region17
  $region16: #{tpu_custom_call.1} parent=0 // pred_region
    _
  $region17: #{tpu_custom_call.1} parent=0 // pred_fallthru
    _
  %v18 = vld [vmem:[%s0] sm:$0xf]
  %v19 = vld [vmem:[%s0 + $0x4] sm:$0xf]
  %v20 = vld [vmem:[%s0 + $0x8] sm:$0xf]
  %v21 = vld [vmem:[%s0 + $0xc] sm:$0xf]
  %v22 = vld [vmem:[%s0 + $0x10] sm:$0xf]
  %v23 = vld [vmem:[%s0 + $0x14] sm:$0xf]
  %v24 = vld [vmem:[%s0 + $0x18] sm:$0xf]
  %v25 = vld [vmem:[%s0 + $0x1c] sm:$0xf]
  %v26 = vld [vmem:[%s1] sm:$0xf]
  %v27 = vld [vmem:[%s1 + $0x4] sm:$0xf]
  %v28 = vld [vmem:[%s1 + $0x8] sm:$0xf]
  %v29 = vld [vmem:[%s1 + $0xc] sm:$0xf]
  %v30 = vld [vmem:[%s3] sm:$0x1]
  %v32 = vlaneseq
  %v33 = vshrl.u32 %v32, 7
  %v34 = vsub.s32 0, %v33
  %v35 = vrot.slane %v30, %v34
  %v45 = vunpack.c.l.b16 %v18
  %v46 = vunpack.c.l.b16 %v19
  %v47 = vunpack.c.l.b16 %v20
  %v48 = vunpack.c.l.b16 %v21
  %v49 = vunpack.c.l.b16 %v22
  %v50 = vunpack.c.l.b16 %v23
  %v51 = vunpack.c.l.b16 %v24
  %v52 = vunpack.c.l.b16 %v25
  %v53 = vpack.c.b16 %v46, %v45
  %v54 = vpack.c.b16 %v48, %v47
  %v55 = vpack.c.b16 %v50, %v49
  %v56 = vpack.c.b16 %v52, %v51
  %v61 = vunpack.c.l.b16 %v26
  %v62 = vunpack.c.l.b16 %v27
  %v63 = vunpack.c.l.b16 %v28
  %v64 = vunpack.c.l.b16 %v29
  %v65 = vpack.c.b16 %v62, %v61
  %v66 = vpack.c.b16 %v64, %v63
  %vm69 = vcmask 261120
  %v71 = vsel %vm69, %v53, 0
  %v74 = vsel %vm69, %v54, 0
  %v77 = vsel %vm69, %v55, 0
  %v80 = vsel %vm69, %v56, 0
  %82 = vmatprep.subr.bf16.mxu0 0
  %83 = vmatpush1.bf16.msra.mxu0 %v65
  %84 = vmatprep.subr.bf16.mxu0 0
  %85 = vmatpush1.bf16.msra.mxu0 %v66
  %86 = vmatprep.subr.bf16.mxu0 0
  %87 = vmatpush1.bf16.msra.mxu0 0
  %88 = vmatprep.subr.bf16.mxu0 0
  %89 = vmatpush1.bf16.msra.mxu0 0
  %90 = vmatprep.subr.bf16.mxu0 0
  %91 = vmatpush1.bf16.msra.mxu0 0
  %92 = vmatprep.subr.bf16.mxu0 0
  %93 = vmatpush1.bf16.msra.mxu0 0
  %94 = vmatprep.subr.bf16.mxu0 0
  %95 = vmatpush1.bf16.msra.mxu0 0
  %96 = vmatprep.subr.bf16.mxu0 0
  %97 = vmatpush1.bf16.msra.mxu0 0
  %98 = vmatprep.subr.bf16.mxu0 0
  %99 = vmatpush1.bf16.msra.mxu0 0
  %100 = vmatprep.subr.bf16.mxu0 0
  %101 = vmatpush1.bf16.msra.mxu0 0
  %102 = vmatprep.subr.bf16.mxu0 0
  %103 = vmatpush1.bf16.msra.mxu0 0
  %104 = vmatprep.subr.bf16.mxu0 0
  %105 = vmatpush1.bf16.msra.mxu0 0
  %106 = vmatprep.subr.bf16.mxu0 0
  %107 = vmatpush1.bf16.msra.mxu0 0
  %108 = vmatprep.subr.bf16.mxu0 0
  %109 = vmatpush1.bf16.msra.mxu0 0
  %110 = vmatprep.subr.bf16.mxu0 0
  %111 = vmatpush1.bf16.msra.mxu0 0
  %112 = vmatprep.subr.bf16.mxu0 0
  %113 = vmatpush1.bf16.msra.mxu0 0
  %114 = vmatprep.mubr.bf16.mxu0 0
  %115 = vmatmul.mubr.bf16.gmra.mrb[0].mxu0 %v71
  %v116 = vpop.f32.mrb[0].mxu0
  %v117 = vadd.f32 %v35, %v116
  %v118 = vpop.f32.mrb[0].mxu0
  %v119 = vpop.f32.mrb[0].mxu0
  %v120 = vadd.f32 %v35, %v119
  %v121 = vpop.f32.mrb[0].mxu0
  %122 = vmatprep.mubr.bf16.mxu0 0
  %123 = vmatmul.mubr.bf16.gmra.mrb[0].mxu0 %v74
  %v124 = vpop.f32.mrb[0].mxu0
  %v125 = vadd.f32 %v35, %v124
  %v126 = vpop.f32.mrb[0].mxu0
  %v127 = vpop.f32.mrb[0].mxu0
  %v128 = vadd.f32 %v35, %v127
  %v129 = vpop.f32.mrb[0].mxu0
  %130 = vmatprep.mubr.bf16.mxu0 0
  %131 = vmatmul.mubr.bf16.gmra.mrb[0].mxu0 %v77
  %v132 = vpop.f32.mrb[0].mxu0
  %v133 = vadd.f32 %v35, %v132
  %v134 = vpop.f32.mrb[0].mxu0
  %v135 = vpop.f32.mrb[0].mxu0
  %v136 = vadd.f32 %v35, %v135
  %v137 = vpop.f32.mrb[0].mxu0
  %138 = vmatprep.mubr.bf16.mxu0 0
  %139 = vmatmul.mubr.bf16.gmra.mrb[0].mxu0 %v80
  %v140 = vpop.f32.mrb[0].mxu0
  %v141 = vadd.f32 %v35, %v140
  %v142 = vpop.f32.mrb[0].mxu0
  %v143 = vpop.f32.mrb[0].mxu0
  %v144 = vadd.f32 %v35, %v143
  %v145 = vpop.f32.mrb[0].mxu0
  %146 = vdwg.mxu0
  %147 = vst [vmem:[#allocation2] sm:$0xff] %v117
  %148 = vst [vmem:[#allocation2 + $0x8] sm:$0xff] %v120
  %149 = vst [vmem:[#allocation2 + $0x10] sm:$0xff] %v125
  %150 = vst [vmem:[#allocation2 + $0x18] sm:$0xff] %v128
  %151 = vst [vmem:[#allocation2 + $0x20] sm:$0xff] %v133
  %152 = vst [vmem:[#allocation2 + $0x28] sm:$0xff] %v136
  %153 = vst [vmem:[#allocation2 + $0x30] sm:$0xff] %v141
  %154 = vst [vmem:[#allocation2 + $0x38] sm:$0xff] %v144
  %v155 = vld [vmem:[%s2] sm:$0xf]
  %v156 = vld [vmem:[%s2 + $0x4] sm:$0xf]
  %v157 = vld [vmem:[%s2 + $0x8] sm:$0xf]
  %v158 = vld [vmem:[%s2 + $0xc] sm:$0xf]
  %v159 = vld [vmem:[#allocation2] sm:$0xff]
  %v164 = vunpack.c.l.b16 %v155
  %v165 = vunpack.c.l.b16 %v156
  %v166 = vunpack.c.l.b16 %v157
  %v167 = vunpack.c.l.b16 %v158
  %v168 = vpack.c.b16 %v165, %v164
  %v169 = vpack.c.b16 %v167, %v166
  %v173 = vsel %vm69, 0, 0
  %175 = vmatprep.subr.bf16.mxu0 0
  %176 = vmatpush1.bf16.msra.mxu0 %v168
  %177 = vmatprep.subr.bf16.mxu0 0
  %178 = vmatpush1.bf16.msra.mxu0 %v169
  %179 = vmatprep.subr.bf16.mxu0 0
  %180 = vmatpush1.bf16.msra.mxu0 0
  %181 = vmatprep.subr.bf16.mxu0 0
  %182 = vmatpush1.bf16.msra.mxu0 0
  %183 = vmatprep.subr.bf16.mxu0 0
  %184 = vmatpush1.bf16.msra.mxu0 0
  %185 = vmatprep.subr.bf16.mxu0 0
  %186 = vmatpush1.bf16.msra.mxu0 0
  %187 = vmatprep.subr.bf16.mxu0 0
  %188 = vmatpush1.bf16.msra.mxu0 0
  %189 = vmatprep.subr.bf16.mxu0 0
  %190 = vmatpush1.bf16.msra.mxu0 0
  %191 = vmatprep.subr.bf16.mxu0 0
  %192 = vmatpush1.bf16.msra.mxu0 0
  %193 = vmatprep.subr.bf16.mxu0 0
  %194 = vmatpush1.bf16.msra.mxu0 0
  %195 = vmatprep.subr.bf16.mxu0 0
  %196 = vmatpush1.bf16.msra.mxu0 0
  %197 = vmatprep.subr.bf16.mxu0 0
  %198 = vmatpush1.bf16.msra.mxu0 0
  %199 = vmatprep.subr.bf16.mxu0 0
  %200 = vmatpush1.bf16.msra.mxu0 0
  %201 = vmatprep.subr.bf16.mxu0 0
  %202 = vmatpush1.bf16.msra.mxu0 0
  %203 = vmatprep.subr.bf16.mxu0 0
  %204 = vmatpush1.bf16.msra.mxu0 0
  %205 = vmatprep.subr.bf16.mxu0 0
  %206 = vmatpush1.bf16.msra.mxu0 0
  %207 = vmatprep.mubr.bf16.mxu0 0
  %208 = vmatmul.mubr.bf16.gmra.mrb[0].mxu0 %v173
  %v209 = vpop.f32.mrb[0].mxu0
  %v210 = vadd.f32 0.0, %v209
  %v211 = vpop.f32.mrb[0].mxu0
  %v212 = vpop.f32.mrb[0].mxu0
  %v213 = vpop.f32.mrb[0].mxu0
  %214 = vdwg.mxu0
  %v215 = vadd.f32 %v159, %v210
  %v216 = vxor.u32 %v215, 2147483648
  %v217 = vmul.f32 %v216, 1.442695
  %v218 = vpow.pop %v217
  %v219 = vadd.f32 %v218, 1.0
  %v220 = vrcp.pop %v219
  %v221 = vmul.f32 1.0, %v220
  %v222 = vtanh.pop %v215
  %v223 = vmul.f32 %v221, 0.0
  %225 = vrot.lane.b32.xlu0 %v222, 64
  %v226 = vpop.permute.xlu0 %225
  %v228 = vmul.f32 %v221, %v226
  %230 = vrot.lane.b32.xlu0 %v228, 32
  %v231 = vpop.permute.xlu0 %230
  %v233 = vadd.f32 %v223, %v231
  %v234 = vtanh.pop %v233
  %236 = vrot.lane.b32.xlu0 %v234, 64
  %v237 = vpop.permute.xlu0 %236
  %v239 = vmul.f32 %v221, %v237
  %v240 = vpack.c.bf16 %v239, %v239
  %v242 = vunpack.c.l.b16 %v240
  %v243 = vpack.c.b16 %v242, %v242
  %244 = vrot.lane.b32.xlu0 %v243, 32
  %v245 = vpop.permute.xlu0 %244
  %vm247 = vcmask 257024
  %248 = vst.msk [vmem:[%s4] sm:$0xf] %vm247, %v245
  %v249 = vld [vmem:[#allocation2 + $0x8] sm:$0xff]
  %250 = vrot.lane.b32.xlu0 %v240, 32
  %v251 = vpop.permute.xlu0 %250
  %v253 = vsel %vm69, %v251, 0
  %255 = vmatprep.subr.bf16.mxu0 0
  %256 = vmatpush1.bf16.msra.mxu0 %v168
  %257 = vmatprep.subr.bf16.mxu0 0
  %258 = vmatpush1.bf16.msra.mxu0 %v169
  %259 = vmatprep.subr.bf16.mxu0 0
  %260 = vmatpush1.bf16.msra.mxu0 0
  %261 = vmatprep.subr.bf16.mxu0 0
  %262 = vmatpush1.bf16.msra.mxu0 0
  %263 = vmatprep.subr.bf16.mxu0 0
  %264 = vmatpush1.bf16.msra.mxu0 0
  %265 = vmatprep.subr.bf16.mxu0 0
  %266 = vmatpush1.bf16.msra.mxu0 0
  %267 = vmatprep.subr.bf16.mxu0 0
  %268 = vmatpush1.bf16.msra.mxu0 0
  %269 = vmatprep.subr.bf16.mxu0 0
  %270 = vmatpush1.bf16.msra.mxu0 0
  %271 = vmatprep.subr.bf16.mxu0 0
  %272 = vmatpush1.bf16.msra.mxu0 0
  %273 = vmatprep.subr.bf16.mxu0 0
  %274 = vmatpush1.bf16.msra.mxu0 0
  %275 = vmatprep.subr.bf16.mxu0 0
  %276 = vmatpush1.bf16.msra.mxu0 0
  %277 = vmatprep.subr.bf16.mxu0 0
  %278 = vmatpush1.bf16.msra.mxu0 0
  %279 = vmatprep.subr.bf16.mxu0 0
  %280 = vmatpush1.bf16.msra.mxu0 0
  %281 = vmatprep.subr.bf16.mxu0 0
  %282 = vmatpush1.bf16.msra.mxu0 0
  %283 = vmatprep.subr.bf16.mxu0 0
  %284 = vmatpush1.bf16.msra.mxu0 0
  %285 = vmatprep.subr.bf16.mxu0 0
  %286 = vmatpush1.bf16.msra.mxu0 0
  %287 = vmatprep.mubr.bf16.mxu0 0
  %288 = vmatmul.mubr.bf16.gmra.mrb[0].mxu0 %v253
  %v289 = vpop.f32.mrb[0].mxu0
  %v290 = vadd.f32 0.0, %v289
  %v291 = vpop.f32.mrb[0].mxu0
  %v292 = vpop.f32.mrb[0].mxu0
  %v293 = vpop.f32.mrb[0].mxu0
  %294 = vdwg.mxu0
  %v295 = vadd.f32 %v249, %v290
  %v296 = vxor.u32 %v295, 2147483648
  %v297 = vmul.f32 %v296, 1.442695
  %v298 = vpow.pop %v297
  %v299 = vadd.f32 %v298, 1.0
  %v300 = vrcp.pop %v299
  %v301 = vmul.f32 1.0, %v300
  %v302 = vtanh.pop %v295
  %v303 = vmul.f32 %v301, %v233
  %305 = vrot.lane.b32.xlu0 %v302, 64
  %v306 = vpop.permute.xlu0 %305
  %v308 = vmul.f32 %v301, %v306
  %310 = vrot.lane.b32.xlu0 %v308, 32
  %v311 = vpop.permute.xlu0 %310
  %v313 = vadd.f32 %v303, %v311
  %v314 = vtanh.pop %v313
  %316 = vrot.lane.b32.xlu0 %v314, 64
  %v317 = vpop.permute.xlu0 %316
  %v319 = vmul.f32 %v301, %v317
  %v320 = vpack.c.bf16 %v319, %v319
  %v322 = vunpack.c.l.b16 %v320
  %v323 = vpack.c.b16 %v322, %v322
  %324 = vrot.lane.b32.xlu0 %v323, 32
  %v325 = vpop.permute.xlu0 %324
  %327 = vst.msk [vmem:[%s4 + $0x4] sm:$0xf] %vm247, %v325
  %v328 = vld [vmem:[#allocation2 + $0x10] sm:$0xff]
  %329 = vrot.lane.b32.xlu0 %v320, 32
  %v330 = vpop.permute.xlu0 %329
  %v332 = vsel %vm69, %v330, 0
  %334 = vmatprep.subr.bf16.mxu0 0
  %335 = vmatpush1.bf16.msra.mxu0 %v168
  %336 = vmatprep.subr.bf16.mxu0 0
  %337 = vmatpush1.bf16.msra.mxu0 %v169
  %338 = vmatprep.subr.bf16.mxu0 0
  %339 = vmatpush1.bf16.msra.mxu0 0
  %340 = vmatprep.subr.bf16.mxu0 0
  %341 = vmatpush1.bf16.msra.mxu0 0
  %342 = vmatprep.subr.bf16.mxu0 0
  %343 = vmatpush1.bf16.msra.mxu0 0
  %344 = vmatprep.subr.bf16.mxu0 0
  %345 = vmatpush1.bf16.msra.mxu0 0
  %346 = vmatprep.subr.bf16.mxu0 0
  %347 = vmatpush1.bf16.msra.mxu0 0
  %348 = vmatprep.subr.bf16.mxu0 0
  %349 = vmatpush1.bf16.msra.mxu0 0
  %350 = vmatprep.subr.bf16.mxu0 0
  %351 = vmatpush1.bf16.msra.mxu0 0
  %352 = vmatprep.subr.bf16.mxu0 0
  %353 = vmatpush1.bf16.msra.mxu0 0
  %354 = vmatprep.subr.bf16.mxu0 0
  %355 = vmatpush1.bf16.msra.mxu0 0
  %356 = vmatprep.subr.bf16.mxu0 0
  %357 = vmatpush1.bf16.msra.mxu0 0
  %358 = vmatprep.subr.bf16.mxu0 0
  %359 = vmatpush1.bf16.msra.mxu0 0
  %360 = vmatprep.subr.bf16.mxu0 0
  %361 = vmatpush1.bf16.msra.mxu0 0
  %362 = vmatprep.subr.bf16.mxu0 0
  %363 = vmatpush1.bf16.msra.mxu0 0
  %364 = vmatprep.subr.bf16.mxu0 0
  %365 = vmatpush1.bf16.msra.mxu0 0
  %366 = vmatprep.mubr.bf16.mxu0 0
  %367 = vmatmul.mubr.bf16.gmra.mrb[0].mxu0 %v332
  %v368 = vpop.f32.mrb[0].mxu0
  %v369 = vadd.f32 0.0, %v368
  %v370 = vpop.f32.mrb[0].mxu0
  %v371 = vpop.f32.mrb[0].mxu0
  %v372 = vpop.f32.mrb[0].mxu0
  %373 = vdwg.mxu0
  %v374 = vadd.f32 %v328, %v369
  %v375 = vxor.u32 %v374, 2147483648
  %v376 = vmul.f32 %v375, 1.442695
  %v377 = vpow.pop %v376
  %v378 = vadd.f32 %v377, 1.0
  %v379 = vrcp.pop %v378
  %v380 = vmul.f32 1.0, %v379
  %v381 = vtanh.pop %v374
  %v382 = vmul.f32 %v380, %v313
  %384 = vrot.lane.b32.xlu0 %v381, 64
  %v385 = vpop.permute.xlu0 %384
  %v387 = vmul.f32 %v380, %v385
  %389 = vrot.lane.b32.xlu0 %v387, 32
  %v390 = vpop.permute.xlu0 %389
  %v392 = vadd.f32 %v382, %v390
  %v393 = vtanh.pop %v392
  %395 = vrot.lane.b32.xlu0 %v393, 64
  %v396 = vpop.permute.xlu0 %395
  %v398 = vmul.f32 %v380, %v396
  %v399 = vpack.c.bf16 %v398, %v398
  %v401 = vunpack.c.l.b16 %v399
  %v402 = vpack.c.b16 %v401, %v401
  %403 = vrot.lane.b32.xlu0 %v402, 32
  %v404 = vpop.permute.xlu0 %403
  %406 = vst.msk [vmem:[%s4 + $0x8] sm:$0xf] %vm247, %v404
  %v407 = vld [vmem:[#allocation2 + $0x18] sm:$0xff]
  %408 = vrot.lane.b32.xlu0 %v399, 32
  %v409 = vpop.permute.xlu0 %408
  %v411 = vsel %vm69, %v409, 0
  %413 = vmatprep.subr.bf16.mxu0 0
  %414 = vmatpush1.bf16.msra.mxu0 %v168
  %415 = vmatprep.subr.bf16.mxu0 0
  %416 = vmatpush1.bf16.msra.mxu0 %v169
  %417 = vmatprep.subr.bf16.mxu0 0
  %418 = vmatpush1.bf16.msra.mxu0 0
  %419 = vmatprep.subr.bf16.mxu0 0
  %420 = vmatpush1.bf16.msra.mxu0 0
  %421 = vmatprep.subr.bf16.mxu0 0
  %422 = vmatpush1.bf16.msra.mxu0 0
  %423 = vmatprep.subr.bf16.mxu0 0
  %424 = vmatpush1.bf16.msra.mxu0 0
  %425 = vmatprep.subr.bf16.mxu0 0
  %426 = vmatpush1.bf16.msra.mxu0 0
  %427 = vmatprep.subr.bf16.mxu0 0
  %428 = vmatpush1.bf16.msra.mxu0 0
  %429 = vmatprep.subr.bf16.mxu0 0
  %430 = vmatpush1.bf16.msra.mxu0 0
  %431 = vmatprep.subr.bf16.mxu0 0
  %432 = vmatpush1.bf16.msra.mxu0 0
  %433 = vmatprep.subr.bf16.mxu0 0
  %434 = vmatpush1.bf16.msra.mxu0 0
  %435 = vmatprep.subr.bf16.mxu0 0
  %436 = vmatpush1.bf16.msra.mxu0 0
  %437 = vmatprep.subr.bf16.mxu0 0
  %438 = vmatpush1.bf16.msra.mxu0 0
  %439 = vmatprep.subr.bf16.mxu0 0
  %440 = vmatpush1.bf16.msra.mxu0 0
  %441 = vmatprep.subr.bf16.mxu0 0
  %442 = vmatpush1.bf16.msra.mxu0 0
  %443 = vmatprep.subr.bf16.mxu0 0
  %444 = vmatpush1.bf16.msra.mxu0 0
  %445 = vmatprep.mubr.bf16.mxu0 0
  %446 = vmatmul.mubr.bf16.gmra.mrb[0].mxu0 %v411
  %v447 = vpop.f32.mrb[0].mxu0
  %v448 = vadd.f32 0.0, %v447
  %v449 = vpop.f32.mrb[0].mxu0
  %v450 = vpop.f32.mrb[0].mxu0
  %v451 = vpop.f32.mrb[0].mxu0
  %452 = vdwg.mxu0
  %v453 = vadd.f32 %v407, %v448
  %v454 = vxor.u32 %v453, 2147483648
  %v455 = vmul.f32 %v454, 1.442695
  %v456 = vpow.pop %v455
  %v457 = vadd.f32 %v456, 1.0
  %v458 = vrcp.pop %v457
  %v459 = vmul.f32 1.0, %v458
  %v460 = vtanh.pop %v453
  %v461 = vmul.f32 %v459, %v392
  %463 = vrot.lane.b32.xlu0 %v460, 64
  %v464 = vpop.permute.xlu0 %463
  %v466 = vmul.f32 %v459, %v464
  %468 = vrot.lane.b32.xlu0 %v466, 32
  %v469 = vpop.permute.xlu0 %468
  %v471 = vadd.f32 %v461, %v469
  %v472 = vtanh.pop %v471
  %474 = vrot.lane.b32.xlu0 %v472, 64
  %v475 = vpop.permute.xlu0 %474
  %v477 = vmul.f32 %v459, %v475
  %v478 = vpack.c.bf16 %v477, %v477
  %v480 = vunpack.c.l.b16 %v478
  %v481 = vpack.c.b16 %v480, %v480
  %482 = vrot.lane.b32.xlu0 %v481, 32
  %v483 = vpop.permute.xlu0 %482
  %485 = vst.msk [vmem:[%s4 + $0xc] sm:$0xf] %vm247, %v483
  %v486 = vld [vmem:[#allocation2 + $0x20] sm:$0xff]
  %487 = vrot.lane.b32.xlu0 %v478, 32
  %v488 = vpop.permute.xlu0 %487
  %v490 = vsel %vm69, %v488, 0
  %492 = vmatprep.subr.bf16.mxu0 0
  %493 = vmatpush1.bf16.msra.mxu0 %v168
  %494 = vmatprep.subr.bf16.mxu0 0
  %495 = vmatpush1.bf16.msra.mxu0 %v169
  %496 = vmatprep.subr.bf16.mxu0 0
  %497 = vmatpush1.bf16.msra.mxu0 0
  %498 = vmatprep.subr.bf16.mxu0 0
  %499 = vmatpush1.bf16.msra.mxu0 0
  %500 = vmatprep.subr.bf16.mxu0 0
  %501 = vmatpush1.bf16.msra.mxu0 0
  %502 = vmatprep.subr.bf16.mxu0 0
  %503 = vmatpush1.bf16.msra.mxu0 0
  %504 = vmatprep.subr.bf16.mxu0 0
  %505 = vmatpush1.bf16.msra.mxu0 0
  %506 = vmatprep.subr.bf16.mxu0 0
  %507 = vmatpush1.bf16.msra.mxu0 0
  %508 = vmatprep.subr.bf16.mxu0 0
  %509 = vmatpush1.bf16.msra.mxu0 0
  %510 = vmatprep.subr.bf16.mxu0 0
  %511 = vmatpush1.bf16.msra.mxu0 0
  %512 = vmatprep.subr.bf16.mxu0 0
  %513 = vmatpush1.bf16.msra.mxu0 0
  %514 = vmatprep.subr.bf16.mxu0 0
  %515 = vmatpush1.bf16.msra.mxu0 0
  %516 = vmatprep.subr.bf16.mxu0 0
  %517 = vmatpush1.bf16.msra.mxu0 0
  %518 = vmatprep.subr.bf16.mxu0 0
  %519 = vmatpush1.bf16.msra.mxu0 0
  %520 = vmatprep.subr.bf16.mxu0 0
  %521 = vmatpush1.bf16.msra.mxu0 0
  %522 = vmatprep.subr.bf16.mxu0 0
  %523 = vmatpush1.bf16.msra.mxu0 0
  %524 = vmatprep.mubr.bf16.mxu0 0
  %525 = vmatmul.mubr.bf16.gmra.mrb[0].mxu0 %v490
  %v526 = vpop.f32.mrb[0].mxu0
  %v527 = vadd.f32 0.0, %v526
  %v528 = vpop.f32.mrb[0].mxu0
  %v529 = vpop.f32.mrb[0].mxu0
  %v530 = vpop.f32.mrb[0].mxu0
  %531 = vdwg.mxu0
  %v532 = vadd.f32 %v486, %v527
  %v533 = vxor.u32 %v532, 2147483648
  %v534 = vmul.f32 %v533, 1.442695
  %v535 = vpow.pop %v534
  %v536 = vadd.f32 %v535, 1.0
  %v537 = vrcp.pop %v536
  %v538 = vmul.f32 1.0, %v537
  %v539 = vtanh.pop %v532
  %v540 = vmul.f32 %v538, %v471
  %542 = vrot.lane.b32.xlu0 %v539, 64
  %v543 = vpop.permute.xlu0 %542
  %v545 = vmul.f32 %v538, %v543
  %547 = vrot.lane.b32.xlu0 %v545, 32
  %v548 = vpop.permute.xlu0 %547
  %v550 = vadd.f32 %v540, %v548
  %v551 = vtanh.pop %v550
  %553 = vrot.lane.b32.xlu0 %v551, 64
  %v554 = vpop.permute.xlu0 %553
  %v556 = vmul.f32 %v538, %v554
  %v557 = vpack.c.bf16 %v556, %v556
  %v559 = vunpack.c.l.b16 %v557
  %v560 = vpack.c.b16 %v559, %v559
  %561 = vrot.lane.b32.xlu0 %v560, 32
  %v562 = vpop.permute.xlu0 %561
  %564 = vst.msk [vmem:[%s4 + $0x10] sm:$0xf] %vm247, %v562
  %v565 = vld [vmem:[#allocation2 + $0x28] sm:$0xff]
  %566 = vrot.lane.b32.xlu0 %v557, 32
  %v567 = vpop.permute.xlu0 %566
  %v569 = vsel %vm69, %v567, 0
  %571 = vmatprep.subr.bf16.mxu0 0
  %572 = vmatpush1.bf16.msra.mxu0 %v168
  %573 = vmatprep.subr.bf16.mxu0 0
  %574 = vmatpush1.bf16.msra.mxu0 %v169
  %575 = vmatprep.subr.bf16.mxu0 0
  %576 = vmatpush1.bf16.msra.mxu0 0
  %577 = vmatprep.subr.bf16.mxu0 0
  %578 = vmatpush1.bf16.msra.mxu0 0
  %579 = vmatprep.subr.bf16.mxu0 0
  %580 = vmatpush1.bf16.msra.mxu0 0
  %581 = vmatprep.subr.bf16.mxu0 0
  %582 = vmatpush1.bf16.msra.mxu0 0
  %583 = vmatprep.subr.bf16.mxu0 0
  %584 = vmatpush1.bf16.msra.mxu0 0
  %585 = vmatprep.subr.bf16.mxu0 0
  %586 = vmatpush1.bf16.msra.mxu0 0
  %587 = vmatprep.subr.bf16.mxu0 0
  %588 = vmatpush1.bf16.msra.mxu0 0
  %589 = vmatprep.subr.bf16.mxu0 0
  %590 = vmatpush1.bf16.msra.mxu0 0
  %591 = vmatprep.subr.bf16.mxu0 0
  %592 = vmatpush1.bf16.msra.mxu0 0
  %593 = vmatprep.subr.bf16.mxu0 0
  %594 = vmatpush1.bf16.msra.mxu0 0
  %595 = vmatprep.subr.bf16.mxu0 0
  %596 = vmatpush1.bf16.msra.mxu0 0
  %597 = vmatprep.subr.bf16.mxu0 0
  %598 = vmatpush1.bf16.msra.mxu0 0
  %599 = vmatprep.subr.bf16.mxu0 0
  %600 = vmatpush1.bf16.msra.mxu0 0
  %601 = vmatprep.subr.bf16.mxu0 0
  %602 = vmatpush1.bf16.msra.mxu0 0
  %603 = vmatprep.mubr.bf16.mxu0 0
  %604 = vmatmul.mubr.bf16.gmra.mrb[0].mxu0 %v569
  %v605 = vpop.f32.mrb[0].mxu0
  %v606 = vadd.f32 0.0, %v605
  %v607 = vpop.f32.mrb[0].mxu0
  %v608 = vpop.f32.mrb[0].mxu0
  %v609 = vpop.f32.mrb[0].mxu0
  %610 = vdwg.mxu0
  %v611 = vadd.f32 %v565, %v606
  %v612 = vxor.u32 %v611, 2147483648
  %v613 = vmul.f32 %v612, 1.442695
  %v614 = vpow.pop %v613
  %v615 = vadd.f32 %v614, 1.0
  %v616 = vrcp.pop %v615
  %v617 = vmul.f32 1.0, %v616
  %v618 = vtanh.pop %v611
  %v619 = vmul.f32 %v617, %v550
  %621 = vrot.lane.b32.xlu0 %v618, 64
  %v622 = vpop.permute.xlu0 %621
  %v624 = vmul.f32 %v617, %v622
  %626 = vrot.lane.b32.xlu0 %v624, 32
  %v627 = vpop.permute.xlu0 %626
  %v629 = vadd.f32 %v619, %v627
  %v630 = vtanh.pop %v629
  %632 = vrot.lane.b32.xlu0 %v630, 64
  %v633 = vpop.permute.xlu0 %632
  %v635 = vmul.f32 %v617, %v633
  %v636 = vpack.c.bf16 %v635, %v635
  %v638 = vunpack.c.l.b16 %v636
  %v639 = vpack.c.b16 %v638, %v638
  %640 = vrot.lane.b32.xlu0 %v639, 32
  %v641 = vpop.permute.xlu0 %640
  %643 = vst.msk [vmem:[%s4 + $0x14] sm:$0xf] %vm247, %v641
  %v644 = vld [vmem:[#allocation2 + $0x30] sm:$0xff]
  %645 = vrot.lane.b32.xlu0 %v636, 32
  %v646 = vpop.permute.xlu0 %645
  %v648 = vsel %vm69, %v646, 0
  %650 = vmatprep.subr.bf16.mxu0 0
  %651 = vmatpush1.bf16.msra.mxu0 %v168
  %652 = vmatprep.subr.bf16.mxu0 0
  %653 = vmatpush1.bf16.msra.mxu0 %v169
  %654 = vmatprep.subr.bf16.mxu0 0
  %655 = vmatpush1.bf16.msra.mxu0 0
  %656 = vmatprep.subr.bf16.mxu0 0
  %657 = vmatpush1.bf16.msra.mxu0 0
  %658 = vmatprep.subr.bf16.mxu0 0
  %659 = vmatpush1.bf16.msra.mxu0 0
  %660 = vmatprep.subr.bf16.mxu0 0
  %661 = vmatpush1.bf16.msra.mxu0 0
  %662 = vmatprep.subr.bf16.mxu0 0
  %663 = vmatpush1.bf16.msra.mxu0 0
  %664 = vmatprep.subr.bf16.mxu0 0
  %665 = vmatpush1.bf16.msra.mxu0 0
  %666 = vmatprep.subr.bf16.mxu0 0
  %667 = vmatpush1.bf16.msra.mxu0 0
  %668 = vmatprep.subr.bf16.mxu0 0
  %669 = vmatpush1.bf16.msra.mxu0 0
  %670 = vmatprep.subr.bf16.mxu0 0
  %671 = vmatpush1.bf16.msra.mxu0 0
  %672 = vmatprep.subr.bf16.mxu0 0
  %673 = vmatpush1.bf16.msra.mxu0 0
  %674 = vmatprep.subr.bf16.mxu0 0
  %675 = vmatpush1.bf16.msra.mxu0 0
  %676 = vmatprep.subr.bf16.mxu0 0
  %677 = vmatpush1.bf16.msra.mxu0 0
  %678 = vmatprep.subr.bf16.mxu0 0
  %679 = vmatpush1.bf16.msra.mxu0 0
  %680 = vmatprep.subr.bf16.mxu0 0
  %681 = vmatpush1.bf16.msra.mxu0 0
  %682 = vmatprep.mubr.bf16.mxu0 0
  %683 = vmatmul.mubr.bf16.gmra.mrb[0].mxu0 %v648
  %v684 = vpop.f32.mrb[0].mxu0
  %v685 = vadd.f32 0.0, %v684
  %v686 = vpop.f32.mrb[0].mxu0
  %v687 = vpop.f32.mrb[0].mxu0
  %v688 = vpop.f32.mrb[0].mxu0
  %689 = vdwg.mxu0
  %v690 = vadd.f32 %v644, %v685
  %v691 = vxor.u32 %v690, 2147483648
  %v692 = vmul.f32 %v691, 1.442695
  %v693 = vpow.pop %v692
  %v694 = vadd.f32 %v693, 1.0
  %v695 = vrcp.pop %v694
  %v696 = vmul.f32 1.0, %v695
  %v697 = vtanh.pop %v690
  %v698 = vmul.f32 %v696, %v629
  %700 = vrot.lane.b32.xlu0 %v697, 64
  %v701 = vpop.permute.xlu0 %700
  %v703 = vmul.f32 %v696, %v701
  %705 = vrot.lane.b32.xlu0 %v703, 32
  %v706 = vpop.permute.xlu0 %705
  %v708 = vadd.f32 %v698, %v706
  %v709 = vtanh.pop %v708
  %711 = vrot.lane.b32.xlu0 %v709, 64
  %v712 = vpop.permute.xlu0 %711
  %v714 = vmul.f32 %v696, %v712
  %v715 = vpack.c.bf16 %v714, %v714
  %v717 = vunpack.c.l.b16 %v715
  %v718 = vpack.c.b16 %v717, %v717
  %719 = vrot.lane.b32.xlu0 %v718, 32
  %v720 = vpop.permute.xlu0 %719
  %722 = vst.msk [vmem:[%s4 + $0x18] sm:$0xf] %vm247, %v720
  %v723 = vld [vmem:[#allocation2 + $0x38] sm:$0xff]
  %724 = vrot.lane.b32.xlu0 %v715, 32
  %v725 = vpop.permute.xlu0 %724
  %v727 = vsel %vm69, %v725, 0
  %729 = vmatprep.subr.bf16.mxu0 0
  %730 = vmatpush1.bf16.msra.mxu0 %v168
  %731 = vmatprep.subr.bf16.mxu0 0
  %732 = vmatpush1.bf16.msra.mxu0 %v169
  %733 = vmatprep.subr.bf16.mxu0 0
  %734 = vmatpush1.bf16.msra.mxu0 0
  %735 = vmatprep.subr.bf16.mxu0 0
  %736 = vmatpush1.bf16.msra.mxu0 0
  %737 = vmatprep.subr.bf16.mxu0 0
  %738 = vmatpush1.bf16.msra.mxu0 0
  %739 = vmatprep.subr.bf16.mxu0 0
  %740 = vmatpush1.bf16.msra.mxu0 0
  %741 = vmatprep.subr.bf16.mxu0 0
  %742 = vmatpush1.bf16.msra.mxu0 0
  %743 = vmatprep.subr.bf16.mxu0 0
  %744 = vmatpush1.bf16.msra.mxu0 0
  %745 = vmatprep.subr.bf16.mxu0 0
  %746 = vmatpush1.bf16.msra.mxu0 0
  %747 = vmatprep.subr.bf16.mxu0 0
  %748 = vmatpush1.bf16.msra.mxu0 0
  %749 = vmatprep.subr.bf16.mxu0 0
  %750 = vmatpush1.bf16.msra.mxu0 0
  %751 = vmatprep.subr.bf16.mxu0 0
  %752 = vmatpush1.bf16.msra.mxu0 0
  %753 = vmatprep.subr.bf16.mxu0 0
  %754 = vmatpush1.bf16.msra.mxu0 0
  %755 = vmatprep.subr.bf16.mxu0 0
  %756 = vmatpush1.bf16.msra.mxu0 0
  %757 = vmatprep.subr.bf16.mxu0 0
  %758 = vmatpush1.bf16.msra.mxu0 0
  %759 = vmatprep.subr.bf16.mxu0 0
  %760 = vmatpush1.bf16.msra.mxu0 0
  %761 = vmatprep.mubr.bf16.mxu0 0
  %762 = vmatmul.mubr.bf16.gmra.mrb[0].mxu0 %v727
  %v763 = vpop.f32.mrb[0].mxu0
  %v764 = vadd.f32 0.0, %v763
  %v765 = vpop.f32.mrb[0].mxu0
  %v766 = vpop.f32.mrb[0].mxu0
  %v767 = vpop.f32.mrb[0].mxu0
  %768 = vdwg.mxu0
  %v769 = vadd.f32 %v723, %v764
  %v770 = vxor.u32 %v769, 2147483648
  %v771 = vmul.f32 %v770, 1.442695
  %v772 = vpow.pop %v771
  %v773 = vadd.f32 %v772, 1.0
  %v774 = vrcp.pop %v773
  %v775 = vmul.f32 1.0, %v774
  %v776 = vtanh.pop %v769
  %v777 = vmul.f32 %v775, %v708
  %779 = vrot.lane.b32.xlu0 %v776, 64
  %v780 = vpop.permute.xlu0 %779
  %v782 = vmul.f32 %v775, %v780
  %784 = vrot.lane.b32.xlu0 %v782, 32
  %v785 = vpop.permute.xlu0 %784
  %v787 = vadd.f32 %v777, %v785
  %v788 = vtanh.pop %v787
  %790 = vrot.lane.b32.xlu0 %v788, 64
  %v791 = vpop.permute.xlu0 %790
  %v793 = vmul.f32 %v775, %v791
  %v794 = vpack.c.bf16 %v793, %v793
  %v796 = vunpack.c.l.b16 %v794
  %v797 = vpack.c.b16 %v796, %v796
  %798 = vrot.lane.b32.xlu0 %v797, 32
  %v799 = vpop.permute.xlu0 %798
  %801 = vst.msk [vmem:[%s4 + $0x1c] sm:$0xf] %vm247, %v799
  // Predicated region
  $region18: #{tpu_custom_call.1} parent=0 // pred_check
    _
  $region19: #{tpu_custom_call.1} parent=0 // pred_check_branch
    %803 = sbr.rel (0) target = $region21
  $region20: #{tpu_custom_call.1} parent=0 // pred_region
    _
  $region21: #{tpu_custom_call.1} parent=0 // pred_fallthru
    _
  // Predicated region
  $region22: #{tpu_custom_call.1} parent=0 // pred_check
    _
  $region23: #{tpu_custom_call.1} parent=0 // pred_check_branch
    %805 = sbr.rel (0) target = $region25
  $region24: #{tpu_custom_call.1} parent=0 // pred_region
    _
  $region25: #{tpu_custom_call.1} parent=0 // pred_fallthru
    _

</llo_original>
